<compile_context>
chip_gen: v5e
topology: v5e:2x2
jax: 0.10.0
libtpu: 0.0.40
codegen_flags: <defaults>
</compile_context>

<pallas_src>
import functools

import jax
import jax.numpy as jnp
from jax.experimental import pallas as pl
from jax.experimental.pallas import tpu as pltpu


def _round_up(v, m):
    return ((v + m - 1) // m) * m


# ----------------------------------------------------------------------------
# Kernel #1: grayscale + LBP codes + 256-bin histogram (MXU nibble einsum)
# ----------------------------------------------------------------------------
def _lbp_hist_kernel(img_ref, mask_ref, hist_ref, *, W, inv_count):
    """img_ref: (NB, C, P) images; mask_ref: (1, P) interior mask;
    hist_ref: (NB, 16, 16) histogram (hi-nibble x lo-nibble)."""
    NB, C, P = img_ref.shape

    # Grayscale (unweighted channel mean) computed in-kernel: the image tensor
    # is read from HBM exactly once, in its native dtype.
    gray = jnp.mean(img_ref[...].astype(jnp.float32), axis=1)       # (NB, P)

    # 8-neighbour offsets (dy, dx), LSB-first bit weights 1, 2, ..., 128.
    offsets = ((-1, -1), (-1, 0), (-1, 1), (0, 1),
               (1, 1), (1, 0), (1, -1), (0, -1))
    code = jnp.zeros((NB, P), jnp.int32)
    for k, (dy, dx) in enumerate(offsets):
        off = dy * W + dx                              # flat neighbour offset
        shift = (-off) % P                             # nbr[p] = gray[p + off]
        nbr = pltpu.roll(gray, shift, axis=1)          # lane rotation (XLU)
        code = code + (nbr >= gray).astype(jnp.int32) * (1 << k)

    # Interior-pixel mask (precomputed on host, constant index_map): border
    # pixels, where the flat roll would wrap a row / the image, contribute 0.
    interior = mask_ref[...]                                         # (1, P)

    # Histogram on the MXU: hi/lo nibble match masks (bf16, values 0/1 exact)
    # contracted over the pixel axis.  hist[b, h, l] = #pixels with code h*16+l.
    hi = code >> 4
    lo = code & 15
    nib = jax.lax.broadcasted_iota(jnp.int32, (NB, 16, P), 1)
    hi_m = ((hi[:, None, :] == nib).astype(jnp.float32)
            * interior[:, None, :]).astype(jnp.bfloat16)             # (NB,16,P)
    lo_m = (lo[:, None, :] == nib).astype(jnp.bfloat16)              # (NB,16,P)
    hist = jnp.einsum("bhp,blp->bhl", hi_m, lo_m,
                      preferred_element_type=jnp.float32)            # (NB,16,16)

    # Store as (NB,16,16); flattened to (NB,256) in the wrapper (free in XLA).
    # This avoids an in-kernel cross-lane reshape; the store is only ~1 KiB/img.
    hist_ref[...] = hist * inv_count


def lbp_descriptor_pallas(x):
    """x: (N, C, H, W) -> (N, 256) normalized LBP histograms."""
    N, C, H, W = x.shape
    P = H * W
    flat = x.reshape(N, C, P)          # native dtype; cast to f32 in-kernel

    # Images per grid step: large enough to amortize per-step overhead, capped
    # so double-buffered input blocks + in-kernel temps stay well under ~40 MiB
    # of VMEM (safe on v7x's 64 MiB physical VMEM).
    itemsize = flat.dtype.itemsize
    per_img = 2 * C * P * itemsize + 40 * P * 4     # input dbl-buf + temps/masks
    nb_cap = max(8, min(128, (40 * 1024 * 1024 // per_img) // 8 * 8))
    if N >= 64:
        NB = min(32, nb_cap)
    elif N >= 16:
        # small batch: keep >=2 grid steps so both v7x TensorCores get work
        NB = min(_round_up(_round_up(N, 8) // 2, 8), nb_cap)
    else:
        NB = max(8, _round_up(N, 8))
    N_pad = _round_up(N, NB)
    if N_pad != N:
        flat = jnp.pad(flat, ((0, N_pad - N), (0, 0), (0, 0)))

    # Interior-pixel mask built once on host (no per-pixel div/mod in-kernel).
    rr = jnp.arange(H)
    cc = jnp.arange(W)
    mask = (((rr >= 1) & (rr <= H - 2))[:, None]
            & ((cc >= 1) & (cc <= W - 2))[None, :]).astype(jnp.float32)
    mask = mask.reshape(1, P)
    inv_count = 1.0 / float(max((H - 2) * (W - 2), 1))

    hist = pl.pallas_call(
        functools.partial(_lbp_hist_kernel, W=W, inv_count=inv_count),
        out_shape=jax.ShapeDtypeStruct((N_pad, 16, 16), jnp.float32),
        grid_spec=pltpu.PrefetchScalarGridSpec(
            num_scalar_prefetch=0,
            grid=(N_pad // NB,),
            in_specs=[pl.BlockSpec((NB, C, P), lambda i: (i, 0, 0)),
                      pl.BlockSpec((1, P), lambda i: (0, 0))],
            out_specs=pl.BlockSpec((NB, 16, 16), lambda i: (i, 0, 0)),
        ),
        compiler_params=pltpu.CompilerParams(
            dimension_semantics=("parallel",),
            vmem_limit_bytes=48 * 1024 * 1024),
    )(flat, mask)
    return hist.reshape(N_pad, 256)[:N]


# ----------------------------------------------------------------------------
# Kernel #2: fused (PCA-folded) MLP:  256 -> 512 -> 1024 -> padded classes
# ----------------------------------------------------------------------------
def _mlp_kernel(x_ref, w0_ref, b0_ref, w1_ref, b1_ref, w2_ref, b2_ref, o_ref):
    x = x_ref[...].astype(jnp.bfloat16)                               # (TM, 256)
    h = jnp.dot(x, w0_ref[...], preferred_element_type=jnp.float32) + b0_ref[...]
    h = jnp.maximum(h, 0.0).astype(jnp.bfloat16)                      # ReLU in f32, cast for MXU
    h = jnp.dot(h, w1_ref[...], preferred_element_type=jnp.float32) + b1_ref[...]
    h = jnp.maximum(h, 0.0).astype(jnp.bfloat16)
    o_ref[...] = jnp.dot(h, w2_ref[...],
                         preferred_element_type=jnp.float32) + b2_ref[...]


def mlp_head_pallas(desc, w_eff, b_eff, w2t, b2, w3t_pad, b3_pad):
    """desc: (N, 256) f32.  Returns (N, OC_pad) f32 logits (columns padded)."""
    N, K = desc.shape
    H1 = w_eff.shape[1]
    H2 = w2t.shape[1]
    OCP = w3t_pad.shape[1]

    # Row tile: 256 for big batches (matches the 256-wide v6e/v7x MXU); keep
    # >=2 grid steps when the batch allows so both v7x TensorCores are used.
    if N >= 512:
        TM = 256
    elif N >= 256:
        TM = 128
    elif N >= 16:
        TM = _round_up(_round_up(N, 8) // 2, 8)
    else:
        TM = max(8, _round_up(N, 8))
    N_pad = _round_up(N, TM)
    xp = jnp.pad(desc, ((0, N_pad - N), (0, 0))) if N_pad != N else desc

    out = pl.pallas_call(
        _mlp_kernel,
        out_shape=jax.ShapeDtypeStruct((N_pad, OCP), jnp.float32),
        grid_spec=pltpu.PrefetchScalarGridSpec(
            num_scalar_prefetch=0,
            grid=(N_pad // TM,),
            in_specs=[
                pl.BlockSpec((TM, K), lambda i: (i, 0)),
                # Weights / biases: constant index_map -> DMA'd once, resident
                # across all row tiles (~1.6 MiB bf16 total).
                pl.BlockSpec((K, H1), lambda i: (0, 0)),
                pl.BlockSpec((1, H1), lambda i: (0, 0)),
                pl.BlockSpec((H1, H2), lambda i: (0, 0)),
                pl.BlockSpec((1, H2), lambda i: (0, 0)),
                pl.BlockSpec((H2, OCP), lambda i: (0, 0)),
                pl.BlockSpec((1, OCP), lambda i: (0, 0)),
            ],
            out_specs=pl.BlockSpec((TM, OCP), lambda i: (i, 0)),
        ),
        compiler_params=pltpu.CompilerParams(
            dimension_semantics=("parallel",)),
    )(xp, w_eff, b_eff, w2t, b2, w3t_pad, b3_pad)
    return out[:N]


# ----------------------------------------------------------------------------
# Full forward pass (equivalent of LBPNet.forward)
# ----------------------------------------------------------------------------
def lbpnet_forward(x, params, *, num_classes, num_subsets=16):
    w1, b1, w2, b2, w3, b3 = params   # torch Linear shapes: w1 (512,16), w2 (1024,512), w3 (C,1024)

    # 1) LBP descriptors (Pallas kernel #1).
    desc = lbp_descriptor_pallas(x)                      # (N, 256) f32

    # 2) Per-batch PCA fit, as the reference does on every forward call.
    # TODO(synk): eigendecomposition has no Pallas equivalent; mean/cov/eigh
    # stay in plain XLA (eigenvector sign/order matches jnp.linalg.eigh, which
    # is as arbitrary as the reference's per-batch fit).
    n = desc.shape[0]
    mean = jnp.mean(desc, axis=0)
    xc = desc - mean
    cov = (xc.T @ xc) / float(max(n - 1, 1))
    _, evecs = jnp.linalg.eigh(cov)
    comps = evecs[:, ::-1][:, :num_subsets]              # (256, num_subsets) top eigenvectors

    # 3) Fold the PCA transform into the first Linear (gives the MXU K=256):
    #    (d - mean) @ comps @ W1.T + b1 == d @ W_eff + b_eff
    w_eff = comps @ w1.T                                 # (256, 512)
    b_eff = (b1 - mean @ w_eff)[None, :]                 # (1, 512)

    # 4) Pad the classifier to a lane-dense (multiple of 128) output width.
    ocp = ((num_classes + 127) // 128) * 128
    w3t = jnp.zeros((w3.shape[1], ocp), jnp.float32).at[:, :num_classes].set(w3.T)
    b3p = jnp.zeros((1, ocp), jnp.float32).at[:, :num_classes].set(b3)

    logits = mlp_head_pallas(
        desc,
        w_eff.astype(jnp.bfloat16), b_eff.astype(jnp.float32),
        w2.T.astype(jnp.bfloat16), b2[None, :].astype(jnp.float32),
        w3t.astype(jnp.bfloat16), b3p.astype(jnp.float32),
    )
    return logits[:, :num_classes]


# ----------------------------------------------------------------------------
# Example / smoke test
# ----------------------------------------------------------------------------
if __name__ == "__main__":
    key = jax.random.PRNGKey(0)
    num_classes = 10
    num_subsets = 16
    N, C, H, W = 2, 4, 16, 16

    k_x, k1, k2, k3, k4, k5, k6 = jax.random.split(key, 7)
    x = jax.random.uniform(k_x, (N, C, H, W), dtype=jnp.float32)

    def lin_init(kw, kb, out_f, in_f):
        bound = 1.0 / (in_f ** 0.5)
        w = jax.random.uniform(kw, (out_f, in_f), minval=-bound, maxval=bound,
                               dtype=jnp.float32)
        b = jax.random.uniform(kb, (out_f,), minval=-bound, maxval=bound,
                               dtype=jnp.float32)
        return w, b

    w1, b1 = lin_init(k1, k2, 512, num_subsets)
    w2, b2 = lin_init(k3, k4, 1024, 512)
    w3, b3 = lin_init(k5, k6, num_classes, 1024)

    logits = lbpnet_forward(x, (w1, b1, w2, b2, w3, b3),
                            num_classes=num_classes, num_subsets=num_subsets)
    logits = jax.block_until_ready(logits)
    assert logits.shape == (N, num_classes), logits.shape
    assert bool(jnp.all(jnp.isfinite(logits)))
    print("KERNEL_OK")
</pallas_src>

<mosaic_0001>
module attributes {stable_mosaic.version = 11 : i64} {
  func.func @_lbp_hist_kernel(%arg0: i32, %arg1: memref<8x4x256xf32, #tpu.memory_space<vmem>>, %arg2: memref<1x256xf32, #tpu.memory_space<vmem>>, %arg3: memref<8x16x16xf32, #tpu.memory_space<vmem>>) attributes {dimension_semantics = [#tpu.dimension_semantics<parallel>], iteration_bounds = array<i64: 1>, scalar_prefetch = 0 : i64, scratch_operands = 0 : i64, tpu.core_type = #tpu.core_type<tc>, window_params = [{transform_indices = @transform_0, window_bounds = array<i64: 8, 4, 256>}, {pipeline_mode = #tpu.pipeline_mode<synchronous>, transform_indices = @transform_1, window_bounds = array<i64: 1, 256>}, {transform_indices = @transform_2, window_bounds = array<i64: 8, 16, 16>}]} {
    %c0 = arith.constant 0 : index
    %c0_0 = arith.constant 0 : index
    %c0_1 = arith.constant 0 : index
    %0 = vector.load %arg1[%c0, %c0_0, %c0_1] : memref<8x4x256xf32, #tpu.memory_space<vmem>>, vector<8x4x256xf32>
    %cst = arith.constant dense<0.000000e+00> : vector<8x256xf32>
    %1 = vector.multi_reduction <add>, %0, %cst [1] : vector<8x4x256xf32> to vector<8x256xf32>
    %cst_2 = arith.constant 4.000000e+00 : f32
    %2 = vector.broadcast %cst_2 : f32 to vector<8x256xf32>
    %3 = arith.divf %1, %2 : vector<8x256xf32>
    %c0_i32 = arith.constant 0 : i32
    %4 = vector.broadcast %c0_i32 : i32 to vector<8x256xi32>
    %c17_i32 = arith.constant 17 : i32
    %5 = tpu.dynamic_rotate %3 by %c17_i32 dim 1 : vector<8x256xf32>, i32 -> vector<8x256xf32>
    %6 = arith.cmpf oge, %5, %3 : vector<8x256xf32>
    %7 = arith.extui %6 : vector<8x256xi1> to vector<8x256xi32>
    %c1_i32 = arith.constant 1 : i32
    %8 = vector.broadcast %c1_i32 : i32 to vector<8x256xi32>
    %9 = arith.muli %7, %8 : vector<8x256xi32>
    %10 = arith.addi %4, %9 : vector<8x256xi32>
    %c16_i32 = arith.constant 16 : i32
    %11 = tpu.dynamic_rotate %3 by %c16_i32 dim 1 : vector<8x256xf32>, i32 -> vector<8x256xf32>
    %12 = arith.cmpf oge, %11, %3 : vector<8x256xf32>
    %13 = arith.extui %12 : vector<8x256xi1> to vector<8x256xi32>
    %c2_i32 = arith.constant 2 : i32
    %14 = vector.broadcast %c2_i32 : i32 to vector<8x256xi32>
    %15 = arith.muli %13, %14 : vector<8x256xi32>
    %16 = arith.addi %10, %15 : vector<8x256xi32>
    %c15_i32 = arith.constant 15 : i32
    %17 = tpu.dynamic_rotate %3 by %c15_i32 dim 1 : vector<8x256xf32>, i32 -> vector<8x256xf32>
    %18 = arith.cmpf oge, %17, %3 : vector<8x256xf32>
    %19 = arith.extui %18 : vector<8x256xi1> to vector<8x256xi32>
    %c4_i32 = arith.constant 4 : i32
    %20 = vector.broadcast %c4_i32 : i32 to vector<8x256xi32>
    %21 = arith.muli %19, %20 : vector<8x256xi32>
    %22 = arith.addi %16, %21 : vector<8x256xi32>
    %c255_i32 = arith.constant 255 : i32
    %23 = tpu.dynamic_rotate %3 by %c255_i32 dim 1 : vector<8x256xf32>, i32 -> vector<8x256xf32>
    %24 = arith.cmpf oge, %23, %3 : vector<8x256xf32>
    %25 = arith.extui %24 : vector<8x256xi1> to vector<8x256xi32>
    %c8_i32 = arith.constant 8 : i32
    %26 = vector.broadcast %c8_i32 : i32 to vector<8x256xi32>
    %27 = arith.muli %25, %26 : vector<8x256xi32>
    %28 = arith.addi %22, %27 : vector<8x256xi32>
    %c239_i32 = arith.constant 239 : i32
    %29 = tpu.dynamic_rotate %3 by %c239_i32 dim 1 : vector<8x256xf32>, i32 -> vector<8x256xf32>
    %30 = arith.cmpf oge, %29, %3 : vector<8x256xf32>
    %31 = arith.extui %30 : vector<8x256xi1> to vector<8x256xi32>
    %c16_i32_3 = arith.constant 16 : i32
    %32 = vector.broadcast %c16_i32_3 : i32 to vector<8x256xi32>
    %33 = arith.muli %31, %32 : vector<8x256xi32>
    %34 = arith.addi %28, %33 : vector<8x256xi32>
    %c240_i32 = arith.constant 240 : i32
    %35 = tpu.dynamic_rotate %3 by %c240_i32 dim 1 : vector<8x256xf32>, i32 -> vector<8x256xf32>
    %36 = arith.cmpf oge, %35, %3 : vector<8x256xf32>
    %37 = arith.extui %36 : vector<8x256xi1> to vector<8x256xi32>
    %c32_i32 = arith.constant 32 : i32
    %38 = vector.broadcast %c32_i32 : i32 to vector<8x256xi32>
    %39 = arith.muli %37, %38 : vector<8x256xi32>
    %40 = arith.addi %34, %39 : vector<8x256xi32>
    %c241_i32 = arith.constant 241 : i32
    %41 = tpu.dynamic_rotate %3 by %c241_i32 dim 1 : vector<8x256xf32>, i32 -> vector<8x256xf32>
    %42 = arith.cmpf oge, %41, %3 : vector<8x256xf32>
    %43 = arith.extui %42 : vector<8x256xi1> to vector<8x256xi32>
    %c64_i32 = arith.constant 64 : i32
    %44 = vector.broadcast %c64_i32 : i32 to vector<8x256xi32>
    %45 = arith.muli %43, %44 : vector<8x256xi32>
    %46 = arith.addi %40, %45 : vector<8x256xi32>
    %c1_i32_4 = arith.constant 1 : i32
    %47 = tpu.dynamic_rotate %3 by %c1_i32_4 dim 1 : vector<8x256xf32>, i32 -> vector<8x256xf32>
    %48 = arith.cmpf oge, %47, %3 : vector<8x256xf32>
    %49 = arith.extui %48 : vector<8x256xi1> to vector<8x256xi32>
    %c128_i32 = arith.constant 128 : i32
    %50 = vector.broadcast %c128_i32 : i32 to vector<8x256xi32>
    %51 = arith.muli %49, %50 : vector<8x256xi32>
    %52 = arith.addi %46, %51 : vector<8x256xi32>
    %c0_5 = arith.constant 0 : index
    %c0_6 = arith.constant 0 : index
    %53 = vector.load %arg2[%c0_5, %c0_6] : memref<1x256xf32, #tpu.memory_space<vmem>>, vector<1x256xf32>
    %c4_i32_7 = arith.constant 4 : i32
    %54 = vector.broadcast %c4_i32_7 : i32 to vector<8x256xi32>
    %55 = arith.shrsi %52, %54 : vector<8x256xi32>
    %c15_i32_8 = arith.constant 15 : i32
    %56 = vector.broadcast %c15_i32_8 : i32 to vector<8x256xi32>
    %57 = arith.andi %52, %56 : vector<8x256xi32>
    %58 = tpu.iota {dimensions = array<i32: 1>} : vector<8x16x256xi32>
    %59 = vector.shape_cast %55 : vector<8x256xi32> to vector<8x1x256xi32>
    %60 = vector.broadcast %59 : vector<8x1x256xi32> to vector<8x16x256xi32>
    %61 = arith.cmpi eq, %60, %58 : vector<8x16x256xi32>
    %62 = arith.extui %61 : vector<8x16x256xi1> to vector<8x16x256xi32>
    %63 = arith.sitofp %62 : vector<8x16x256xi32> to vector<8x16x256xf32>
    %64 = vector.shape_cast %53 : vector<1x256xf32> to vector<1x1x256xf32>
    %65 = vector.broadcast %64 : vector<1x1x256xf32> to vector<8x16x256xf32>
    %66 = arith.mulf %63, %65 : vector<8x16x256xf32>
    %67 = arith.truncf %66 : vector<8x16x256xf32> to vector<8x16x256xbf16>
    %68 = vector.shape_cast %57 : vector<8x256xi32> to vector<8x1x256xi32>
    %69 = vector.broadcast %68 : vector<8x1x256xi32> to vector<8x16x256xi32>
    %70 = arith.cmpi eq, %69, %58 : vector<8x16x256xi32>
    %71 = arith.extui %70 : vector<8x16x256xi1> to vector<8x16x256xi32>
    %72 = arith.sitofp %71 : vector<8x16x256xi32> to vector<8x16x256xf32>
    %73 = arith.truncf %72 : vector<8x16x256xf32> to vector<8x16x256xbf16>
    "tpu.trace_start"() <{level = 10 : i32, message = "bhp,blp->bhl"}> : () -> ()
    %cst_9 = arith.constant dense<0.000000e+00> : vector<8x16x16xf32>
    %74 = tpu.matmul %67, %73, %cst_9 {dimension_numbers = #tpu.dot_dimension_numbers<[2], [2], [1], [1], [0, 0, 0, 1, 1, 1], [0], [0]>} : vector<8x16x256xbf16>, vector<8x16x256xbf16>, vector<8x16x16xf32> -> vector<8x16x16xf32>
    "tpu.trace_stop"() : () -> ()
    %cst_10 = arith.constant 0.00510204071 : f32
    %75 = vector.broadcast %cst_10 : f32 to vector<8x16x16xf32>
    %76 = arith.mulf %74, %75 : vector<8x16x16xf32>
    %c0_11 = arith.constant 0 : index
    %c0_12 = arith.constant 0 : index
    %c0_13 = arith.constant 0 : index
    %77 = vector.load %arg3[%c0_11, %c0_12, %c0_13] : memref<8x16x16xf32, #tpu.memory_space<vmem>>, vector<8x16x16xf32>
    tpu.vector_store %arg3[%c0_11, %c0_12, %c0_13], %76 {strides = array<i32>} : memref<8x16x16xf32, #tpu.memory_space<vmem>>, vector<8x16x16xf32>,
    return
  }
  func.func @transform_0(%arg0: i32) -> (i32, i32, i32) {
    %c0_i32 = arith.constant 0 : i32
    %c0_i32_0 = arith.constant 0 : i32
    %c0_i32_1 = arith.constant 0 : i32
    return %arg0, %c0_i32, %c0_i32_0 : i32, i32, i32
  }
  func.func @transform_1(%arg0: i32) -> (i32, i32) {
    %c0_i32 = arith.constant 0 : i32
    %c0_i32_0 = arith.constant 0 : i32
    %c0_i32_1 = arith.constant 0 : i32
    return %c0_i32, %c0_i32_0 : i32, i32
  }
  func.func @transform_2(%arg0: i32) -> (i32, i32, i32) {
    %c0_i32 = arith.constant 0 : i32
    %c0_i32_0 = arith.constant 0 : i32
    %c0_i32_1 = arith.constant 0 : i32
    return %arg0, %c0_i32, %c0_i32_0 : i32, i32, i32
  }
}

</mosaic_0001>

<llo_original>
// kernel: tpu_custom_call.1
$region0: #{tpu_custom_call.1}
  #allocation0 [shape = 'u32[]', space=smem, size = 0x4, offset = 0x4, fixed_abs, tag = 'smem constant byte address 0x4 - core index']
  #allocation1 [shape = 'u32[72,128]{1,0:T(1,128)}', space=vmem, size = 0x9000, scoped, tag = 'internal scratch']
  %s0 = inlined_call_operand.hbm [shape: f32[8,4,256], index: 0, kind: input, shape index: {}]
  %s1 = inlined_call_operand.hbm [shape: f32[1,256], index: 1, kind: input, shape index: {}]
  %s2 = inlined_call_operand.hbm [shape: f32[8,16,16], index: 2, kind: output, shape index: {}]
  %s3 = sld [smem:[#allocation0]]
  $region26: #{tpu_custom_call.1} parent=0
    _
  %s5 = ssub.s32 1, %s3
  %s6 = scalar_select 0, %s5, %s3
  $region1: #{tpu_custom_call.1} parent=0
    #allocation2 [shape = 'u8[32768]{0}', space=vmem, size = 0x8000, scoped, tag = 'input window, operand 0, single buffered']
    #allocation3 [shape = 's32[1]{0}', space=sflag, size = 0x4, scoped, tag = 'scoped memory for tpu_custom_call.1']
    #allocation4 [shape = 's32[1]{0}', space=sflag, size = 0x4, scoped, tag = 'scoped memory for tpu_custom_call.1']
    #allocation5 [shape = 'u8[1024]{0}', space=vmem, size = 0x400, scoped, tag = 'input window, operand 1, single buffered']
    #allocation6 [shape = 's32[1]{0}', space=sflag, size = 0x4, scoped, tag = 'scoped memory for tpu_custom_call.1']
    #allocation7 [shape = 'u8[65536]{0}', space=vmem, size = 0x10000, scoped, tag = 'output window, operand 0, single buffered']
    %7 = vsyncpa [#allocation3], 0
    %8 = vsyncpa [#allocation6], 0
    %9 = vsyncpa [#allocation4], 0
    // Predicated region
    $region2: #{tpu_custom_call.1} parent=1 // pred_check
      _
    $region3: #{tpu_custom_call.1} parent=1 // pred_check_branch
      %11 = sbr.rel (0) target = $region5
    $region4: #{tpu_custom_call.1} parent=1 // pred_region
      %13 = vsyncadd [#allocation3], 0
      %s14 = sshll.u32 %s0, 4
      %s15 = int_to_ptr.hbm [resolvable:$true] %s14
      %s16 = sshll.u32 [#allocation2], 4
      %s17 = int_to_ptr.vmem [resolvable:$true] %s16
      %22 = dma.hbm_to_vmem [thread:$0]  %s15, 1024, %s17, [#allocation3], 128, 128, 8
    $region5: #{tpu_custom_call.1} parent=1 // pred_fallthru
      _
    // Predicated region
    $region6: #{tpu_custom_call.1} parent=1 // pred_check
      _
    $region7: #{tpu_custom_call.1} parent=1 // pred_check_branch
      %24 = sbr.rel (0) target = $region9
    $region8: #{tpu_custom_call.1} parent=1 // pred_region
      %26 = vsyncadd [#allocation6], 0
      %s28 = sshll.u32 %s1, 4
      %s29 = int_to_ptr.hbm [resolvable:$true] %s28
      %s30 = sshll.u32 [#allocation5], 4
      %s31 = int_to_ptr.vmem [resolvable:$true] %s30
      %33 = dma.hbm_to_vmem [thread:$0]  %s29, 32, %s31, [#allocation6]
    $region9: #{tpu_custom_call.1} parent=1 // pred_fallthru
      _
    // Predicated region
    $region10: #{tpu_custom_call.1} parent=1 // pred_check
      _
    $region11: #{tpu_custom_call.1} parent=1 // pred_check_branch
      %35 = sbr.rel (0) target = $region13
    $region12: #{tpu_custom_call.1} parent=1 // pred_region
      %37 = dma.done [#allocation3], 1024
    $region13: #{tpu_custom_call.1} parent=1 // pred_fallthru
      _
    // Predicated region
    $region14: #{tpu_custom_call.1} parent=1 // pred_check
      _
    $region15: #{tpu_custom_call.1} parent=1 // pred_check_branch
      %39 = sbr.rel (0) target = $region17
    $region16: #{tpu_custom_call.1} parent=1 // pred_region
      %41 = dma.done [#allocation6], 32
    $region17: #{tpu_custom_call.1} parent=1 // pred_fallthru
      _
    %v43 = vld [vmem:[#allocation2] sm:$0xff]
    %v44 = vld [vmem:[#allocation2 + $0x8] sm:$0xff]
    %v45 = vld [vmem:[#allocation2 + $0x10] sm:$0xff]
    %v46 = vld [vmem:[#allocation2 + $0x18] sm:$0xff]
    %v47 = vld [vmem:[#allocation2 + $0x20] sm:$0xff]
    %v48 = vld [vmem:[#allocation2 + $0x28] sm:$0xff]
    %v49 = vld [vmem:[#allocation2 + $0x30] sm:$0xff]
    %v50 = vld [vmem:[#allocation2 + $0x38] sm:$0xff]
    %59 = vst [vmem:[#allocation1] ss:$2 sm:$0xff] %v43
    %v60 = vld.sshfl [vmem:[#allocation1] sm:$0xff pattern:$0x75316420]
    %v61 = vld.sshfl [vmem:[#allocation1 + $0x8] sm:$0xff pattern:$0x75316420]
    %s62 = scalar_lea.vmem [#allocation1], 16
    %63 = vst [vmem:[%s62] ss:$2 sm:$0xff] %v44
    %v64 = vld.sshfl [vmem:[#allocation1 + $0x10] sm:$0xff pattern:$0x75316420]
    %v65 = vld.sshfl [vmem:[#allocation1 + $0x18] sm:$0xff pattern:$0x75316420]
    %s66 = scalar_lea.vmem [#allocation1], 32
    %67 = vst [vmem:[%s66] ss:$2 sm:$0xff] %v45
    %v68 = vld.sshfl [vmem:[#allocation1 + $0x20] sm:$0xff pattern:$0x75316420]
    %v69 = vld.sshfl [vmem:[#allocation1 + $0x28] sm:$0xff pattern:$0x75316420]
    %s70 = scalar_lea.vmem [#allocation1], 48
    %71 = vst [vmem:[%s70] ss:$2 sm:$0xff] %v46
    %v72 = vld.sshfl [vmem:[#allocation1 + $0x30] sm:$0xff pattern:$0x75316420]
    %v73 = vld.sshfl [vmem:[#allocation1 + $0x38] sm:$0xff pattern:$0x75316420]
    %74 = vst [vmem:[#allocation1] ss:$2 sm:$0xff] %v47
    %v75 = vld.sshfl [vmem:[#allocation1] sm:$0xff pattern:$0x75316420]
    %v76 = vld.sshfl [vmem:[#allocation1 + $0x8] sm:$0xff pattern:$0x75316420]
    %77 = vst [vmem:[%s62] ss:$2 sm:$0xff] %v48
    %v78 = vld.sshfl [vmem:[#allocation1 + $0x10] sm:$0xff pattern:$0x75316420]
    %v79 = vld.sshfl [vmem:[#allocation1 + $0x18] sm:$0xff pattern:$0x75316420]
    %80 = vst [vmem:[%s66] ss:$2 sm:$0xff] %v49
    %v81 = vld.sshfl [vmem:[#allocation1 + $0x20] sm:$0xff pattern:$0x75316420]
    %v82 = vld.sshfl [vmem:[#allocation1 + $0x28] sm:$0xff pattern:$0x75316420]
    %83 = vst [vmem:[%s70] ss:$2 sm:$0xff] %v50
    %v84 = vld.sshfl [vmem:[#allocation1 + $0x30] sm:$0xff pattern:$0x75316420]
    %v85 = vld.sshfl [vmem:[#allocation1 + $0x38] sm:$0xff pattern:$0x75316420]
    %vm102 = vcmask 1043456
    %v103 = vsel %vm102, %v60, 0.0
    %v104 = vrot.slane %v103, 4
    %v105 = vadd.f32 %v103, %v104
    %v106 = vrot.slane %v105, 2
    %v107 = vadd.f32 %v105, %v106
    %v108 = vrot.slane %v107, 1
    %v109 = vadd.f32 %v107, %v108
    %v110 = vsel %vm102, %v61, 0.0
    %v111 = vrot.slane %v110, 4
    %v112 = vadd.f32 %v110, %v111
    %v113 = vrot.slane %v112, 2
    %v114 = vadd.f32 %v112, %v113
    %v115 = vrot.slane %v114, 1
    %v116 = vadd.f32 %v114, %v115
    %v117 = vsel %vm102, %v64, 0.0
    %v118 = vrot.slane %v117, 4
    %v119 = vadd.f32 %v117, %v118
    %v120 = vrot.slane %v119, 2
    %v121 = vadd.f32 %v119, %v120
    %v122 = vrot.slane %v121, 1
    %v123 = vadd.f32 %v121, %v122
    %v124 = vsel %vm102, %v65, 0.0
    %v125 = vrot.slane %v124, 4
    %v126 = vadd.f32 %v124, %v125
    %v127 = vrot.slane %v126, 2
    %v128 = vadd.f32 %v126, %v127
    %v129 = vrot.slane %v128, 1
    %v130 = vadd.f32 %v128, %v129
    %v131 = vsel %vm102, %v68, 0.0
    %v132 = vrot.slane %v131, 4
    %v133 = vadd.f32 %v131, %v132
    %v134 = vrot.slane %v133, 2
    %v135 = vadd.f32 %v133, %v134
    %v136 = vrot.slane %v135, 1
    %v137 = vadd.f32 %v135, %v136
    %v138 = vsel %vm102, %v69, 0.0
    %v139 = vrot.slane %v138, 4
    %v140 = vadd.f32 %v138, %v139
    %v141 = vrot.slane %v140, 2
    %v142 = vadd.f32 %v140, %v141
    %v143 = vrot.slane %v142, 1
    %v144 = vadd.f32 %v142, %v143
    %v145 = vsel %vm102, %v72, 0.0
    %v146 = vrot.slane %v145, 4
    %v147 = vadd.f32 %v145, %v146
    %v148 = vrot.slane %v147, 2
    %v149 = vadd.f32 %v147, %v148
    %v150 = vrot.slane %v149, 1
    %v151 = vadd.f32 %v149, %v150
    %v152 = vsel %vm102, %v73, 0.0
    %v153 = vrot.slane %v152, 4
    %v154 = vadd.f32 %v152, %v153
    %v155 = vrot.slane %v154, 2
    %v156 = vadd.f32 %v154, %v155
    %v157 = vrot.slane %v156, 1
    %v158 = vadd.f32 %v156, %v157
    %v159 = vsel %vm102, %v75, 0.0
    %v160 = vrot.slane %v159, 4
    %v161 = vadd.f32 %v159, %v160
    %v162 = vrot.slane %v161, 2
    %v163 = vadd.f32 %v161, %v162
    %v164 = vrot.slane %v163, 1
    %v165 = vadd.f32 %v163, %v164
    %v166 = vsel %vm102, %v76, 0.0
    %v167 = vrot.slane %v166, 4
    %v168 = vadd.f32 %v166, %v167
    %v169 = vrot.slane %v168, 2
    %v170 = vadd.f32 %v168, %v169
    %v171 = vrot.slane %v170, 1
    %v172 = vadd.f32 %v170, %v171
    %v173 = vsel %vm102, %v78, 0.0
    %v174 = vrot.slane %v173, 4
    %v175 = vadd.f32 %v173, %v174
    %v176 = vrot.slane %v175, 2
    %v177 = vadd.f32 %v175, %v176
    %v178 = vrot.slane %v177, 1
    %v179 = vadd.f32 %v177, %v178
    %v180 = vsel %vm102, %v79, 0.0
    %v181 = vrot.slane %v180, 4
    %v182 = vadd.f32 %v180, %v181
    %v183 = vrot.slane %v182, 2
    %v184 = vadd.f32 %v182, %v183
    %v185 = vrot.slane %v184, 1
    %v186 = vadd.f32 %v184, %v185
    %v187 = vsel %vm102, %v81, 0.0
    %v188 = vrot.slane %v187, 4
    %v189 = vadd.f32 %v187, %v188
    %v190 = vrot.slane %v189, 2
    %v191 = vadd.f32 %v189, %v190
    %v192 = vrot.slane %v191, 1
    %v193 = vadd.f32 %v191, %v192
    %v194 = vsel %vm102, %v82, 0.0
    %v195 = vrot.slane %v194, 4
    %v196 = vadd.f32 %v194, %v195
    %v197 = vrot.slane %v196, 2
    %v198 = vadd.f32 %v196, %v197
    %v199 = vrot.slane %v198, 1
    %v200 = vadd.f32 %v198, %v199
    %v201 = vsel %vm102, %v84, 0.0
    %v202 = vrot.slane %v201, 4
    %v203 = vadd.f32 %v201, %v202
    %v204 = vrot.slane %v203, 2
    %v205 = vadd.f32 %v203, %v204
    %v206 = vrot.slane %v205, 1
    %v207 = vadd.f32 %v205, %v206
    %v208 = vsel %vm102, %v85, 0.0
    %v209 = vrot.slane %v208, 4
    %v210 = vadd.f32 %v208, %v209
    %v211 = vrot.slane %v210, 2
    %v212 = vadd.f32 %v210, %v211
    %v213 = vrot.slane %v212, 1
    %v214 = vadd.f32 %v212, %v213
    %v215 = vrcp.pop 4.0
    %v216 = vmul.f32 4.0, %v215
    %v217 = vsub.f32 1.0, %v216
    %v218 = vmul.f32 %v215, %v217
    %v219 = vadd.f32 %v215, %v218
    %vm220 = vweird.f32 %v215
    %v221 = vsel %vm220, %v215, %v219
    %v222 = vmul.f32 %v109, %v221
    %v223 = vmul.f32 %v116, %v221
    %v224 = vmul.f32 %v123, %v221
    %v225 = vmul.f32 %v130, %v221
    %v226 = vmul.f32 %v137, %v221
    %v227 = vmul.f32 %v144, %v221
    %v228 = vmul.f32 %v151, %v221
    %v229 = vmul.f32 %v158, %v221
    %v230 = vmul.f32 %v165, %v221
    %v231 = vmul.f32 %v172, %v221
    %v232 = vmul.f32 %v179, %v221
    %v233 = vmul.f32 %v186, %v221
    %v234 = vmul.f32 %v193, %v221
    %v235 = vmul.f32 %v200, %v221
    %v236 = vmul.f32 %v207, %v221
    %v237 = vmul.f32 %v214, %v221
    %vm254 = vcmask 1041409
    %v255 = vsel %vm254, %v224, %v222
    %vm256 = vcmask 1042434
    %v257 = vsel %vm256, %v226, %v255
    %vm258 = vcmask 1043459
    %v259 = vsel %vm258, %v228, %v257
    %vm260 = vcmask 1044484
    %v261 = vsel %vm260, %v230, %v259
    %vm262 = vcmask 1045509
    %v263 = vsel %vm262, %v232, %v261
    %vm264 = vcmask 1046534
    %v265 = vsel %vm264, %v234, %v263
    %vm266 = vcmask 1047559
    %v267 = vsel %vm266, %v236, %v265
    %v268 = vsel %vm254, %v225, %v223
    %v269 = vsel %vm256, %v227, %v268
    %v270 = vsel %vm258, %v229, %v269
    %v271 = vsel %vm260, %v231, %v270
    %v272 = vsel %vm262, %v233, %v271
    %v273 = vsel %vm264, %v235, %v272
    %v274 = vsel %vm266, %v237, %v273
    %277 = vrot.lane.b32.xlu0 %v267, 17
    %v278 = vpop.permute.xlu0 %277
    %279 = vrot.lane.b32.xlu0 %v274, 17
    %v280 = vpop.permute.xlu0 %279
    %v281 = vlaneseq
    %v282 = vand.u32 %v281, 127
    %vm283 = vcmp.lt.s32.totalorder %v282, 17
    %v284 = vsel %vm283, %v278, %v280
    %v285 = vsel %vm283, %v280, %v278
    %vm286 = vcmp.ge.f32.partialorder %v285, %v267
    %vm287 = vcmp.ge.f32.partialorder %v284, %v274
    %v288 = vsel %vm286, 1, 0
    %v289 = vsel %vm287, 1, 0
    %290 = vrot.lane.b32.xlu0 %v267, 16
    %v291 = vpop.permute.xlu0 %290
    %292 = vrot.lane.b32.xlu0 %v274, 16
    %v293 = vpop.permute.xlu0 %292
    %vm294 = vcmp.lt.s32.totalorder %v282, 16
    %v295 = vsel %vm294, %v291, %v293
    %v296 = vsel %vm294, %v293, %v291
    %vm297 = vcmp.ge.f32.partialorder %v296, %v267
    %vm298 = vcmp.ge.f32.partialorder %v295, %v274
    %v299 = vsel %vm297, 1, 0
    %v300 = vsel %vm298, 1, 0
    %v301 = vmul.u32 %v299, 2
    %v302 = vmul.u32 %v300, 2
    %v303 = vadd.s32 %v288, %v301
    %v304 = vadd.s32 %v289, %v302
    %305 = vrot.lane.b32.xlu0 %v267, 15
    %v306 = vpop.permute.xlu0 %305
    %307 = vrot.lane.b32.xlu0 %v274, 15
    %v308 = vpop.permute.xlu0 %307
    %vm309 = vcmp.lt.s32.totalorder %v282, 15
    %v310 = vsel %vm309, %v306, %v308
    %v311 = vsel %vm309, %v308, %v306
    %vm312 = vcmp.ge.f32.partialorder %v311, %v267
    %vm313 = vcmp.ge.f32.partialorder %v310, %v274
    %v314 = vsel %vm312, 1, 0
    %v315 = vsel %vm313, 1, 0
    %v316 = vmul.u32 %v314, 4
    %v317 = vmul.u32 %v315, 4
    %v318 = vadd.s32 %v303, %v316
    %v319 = vadd.s32 %v304, %v317
    %320 = vrot.lane.b32.xlu0 %v267, 127
    %v321 = vpop.permute.xlu0 %320
    %322 = vrot.lane.b32.xlu0 %v274, 127
    %v323 = vpop.permute.xlu0 %322
    %vm324 = vcmp.lt.s32.totalorder %v282, 127
    %v325 = vsel %vm324, %v321, %v323
    %v326 = vsel %vm324, %v323, %v321
    %vm327 = vcmp.ge.f32.partialorder %v325, %v267
    %vm328 = vcmp.ge.f32.partialorder %v326, %v274
    %v329 = vsel %vm327, 1, 0
    %v330 = vsel %vm328, 1, 0
    %v331 = vmul.u32 %v329, 8
    %v332 = vmul.u32 %v330, 8
    %v333 = vadd.s32 %v318, %v331
    %v334 = vadd.s32 %v319, %v332
    %335 = vrot.lane.b32.xlu0 %v267, 111
    %v336 = vpop.permute.xlu0 %335
    %337 = vrot.lane.b32.xlu0 %v274, 111
    %v338 = vpop.permute.xlu0 %337
    %vm339 = vcmp.lt.s32.totalorder %v282, 111
    %v340 = vsel %vm339, %v336, %v338
    %v341 = vsel %vm339, %v338, %v336
    %vm342 = vcmp.ge.f32.partialorder %v340, %v267
    %vm343 = vcmp.ge.f32.partialorder %v341, %v274
    %v344 = vsel %vm342, 1, 0
    %v345 = vsel %vm343, 1, 0
    %v346 = vmul.u32 %v344, 16
    %v347 = vmul.u32 %v345, 16
    %v348 = vadd.s32 %v333, %v346
    %v349 = vadd.s32 %v334, %v347
    %350 = vrot.lane.b32.xlu0 %v267, 112
    %v351 = vpop.permute.xlu0 %350
    %352 = vrot.lane.b32.xlu0 %v274, 112
    %v353 = vpop.permute.xlu0 %352
    %vm354 = vcmp.lt.s32.totalorder %v282, 112
    %v355 = vsel %vm354, %v351, %v353
    %v356 = vsel %vm354, %v353, %v351
    %vm357 = vcmp.ge.f32.partialorder %v355, %v267
    %vm358 = vcmp.ge.f32.partialorder %v356, %v274
    %v359 = vsel %vm357, 1, 0
    %v360 = vsel %vm358, 1, 0
    %v361 = vmul.u32 %v359, 32
    %v362 = vmul.u32 %v360, 32
    %v363 = vadd.s32 %v348, %v361
    %v364 = vadd.s32 %v349, %v362
    %365 = vrot.lane.b32.xlu0 %v267, 113
    %v366 = vpop.permute.xlu0 %365
    %367 = vrot.lane.b32.xlu0 %v274, 113
    %v368 = vpop.permute.xlu0 %367
    %vm369 = vcmp.lt.s32.totalorder %v282, 113
    %v370 = vsel %vm369, %v366, %v368
    %v371 = vsel %vm369, %v368, %v366
    %vm372 = vcmp.ge.f32.partialorder %v370, %v267
    %vm373 = vcmp.ge.f32.partialorder %v371, %v274
    %v374 = vsel %vm372, 1, 0
    %v375 = vsel %vm373, 1, 0
    %v376 = vmul.u32 %v374, 64
    %v377 = vmul.u32 %v375, 64
    %v378 = vadd.s32 %v363, %v376
    %v379 = vadd.s32 %v364, %v377
    %380 = vrot.lane.b32.xlu0 %v267, 1
    %v381 = vpop.permute.xlu0 %380
    %382 = vrot.lane.b32.xlu0 %v274, 1
    %v383 = vpop.permute.xlu0 %382
    %vm384 = vcmp.lt.s32.totalorder %v282, 1
    %v385 = vsel %vm384, %v381, %v383
    %v386 = vsel %vm384, %v383, %v381
    %vm387 = vcmp.ge.f32.partialorder %v386, %v267
    %vm388 = vcmp.ge.f32.partialorder %v385, %v274
    %v389 = vsel %vm387, 1, 0
    %v390 = vsel %vm388, 1, 0
    %v391 = vmul.u32 %v389, 128
    %v392 = vmul.u32 %v390, 128
    %v393 = vadd.s32 %v378, %v391
    %v394 = vadd.s32 %v379, %v392
    %v395 = vld [vmem:[#allocation5] sm:$0x3]
    %v396 = vshra.s32 %v393, 4
    %v397 = vshra.s32 %v394, 4
    %v398 = vand.u32 %v393, 15
    %v399 = vand.u32 %v394, 15
    %v400 = vlaneseq
    %v401 = vshrl.u32 %v400, 7
    %v402 = vadd.s32 %v401, 8
    %v403 = vrot.slane %v397, 7
    %vm404 = vcmask 1040384
    %v405 = vsel %vm404, %v396, %v403
    %v406 = vsel %vm254, %v396, %v403
    %v407 = vrot.slane %v406, 1
    %v408 = vsel %vm256, %v396, %v403
    %v409 = vrot.slane %v408, 2
    %v410 = vsel %vm258, %v396, %v403
    %v411 = vrot.slane %v410, 3
    %v412 = vsel %vm260, %v396, %v403
    %v413 = vrot.slane %v412, 4
    %v414 = vsel %vm262, %v396, %v403
    %v415 = vrot.slane %v414, 5
    %v416 = vsel %vm264, %v396, %v403
    %v417 = vrot.slane %v416, 6
    %vm418 = vcmask 1046528
    %v419 = vsel %vm418, %v403, %v396
    %v420 = vrot.slane %v419, 7
    %v421 = vperm.slane %v405, 0
    %v422 = vperm.slane %v405, 1
    %v423 = vperm.slane %v407, 0
    %v424 = vperm.slane %v407, 1
    %v425 = vperm.slane %v409, 0
    %v426 = vperm.slane %v409, 1
    %v427 = vperm.slane %v411, 0
    %v428 = vperm.slane %v411, 1
    %v429 = vperm.slane %v413, 0
    %v430 = vperm.slane %v413, 1
    %v431 = vperm.slane %v415, 0
    %v432 = vperm.slane %v415, 1
    %v433 = vperm.slane %v417, 0
    %v434 = vperm.slane %v417, 1
    %v435 = vperm.slane %v420, 0
    %v436 = vperm.slane %v420, 1
    %vm437 = vcmp.eq.s32.totalorder %v421, %v401
    %vm438 = vcmp.eq.s32.totalorder %v422, %v401
    %vm439 = vcmp.eq.s32.totalorder %v421, %v402
    %vm440 = vcmp.eq.s32.totalorder %v422, %v402
    %vm441 = vcmp.eq.s32.totalorder %v423, %v401
    %vm442 = vcmp.eq.s32.totalorder %v424, %v401
    %vm443 = vcmp.eq.s32.totalorder %v423, %v402
    %vm444 = vcmp.eq.s32.totalorder %v424, %v402
    %vm445 = vcmp.eq.s32.totalorder %v425, %v401
    %vm446 = vcmp.eq.s32.totalorder %v426, %v401
    %vm447 = vcmp.eq.s32.totalorder %v425, %v402
    %vm448 = vcmp.eq.s32.totalorder %v426, %v402
    %vm449 = vcmp.eq.s32.totalorder %v427, %v401
    %vm450 = vcmp.eq.s32.totalorder %v428, %v401
    %vm451 = vcmp.eq.s32.totalorder %v427, %v402
    %vm452 = vcmp.eq.s32.totalorder %v428, %v402
    %vm453 = vcmp.eq.s32.totalorder %v429, %v401
    %vm454 = vcmp.eq.s32.totalorder %v430, %v401
    %vm455 = vcmp.eq.s32.totalorder %v429, %v402
    %vm456 = vcmp.eq.s32.totalorder %v430, %v402
    %vm457 = vcmp.eq.s32.totalorder %v431, %v401
    %vm458 = vcmp.eq.s32.totalorder %v432, %v401
    %vm459 = vcmp.eq.s32.totalorder %v431, %v402
    %vm460 = vcmp.eq.s32.totalorder %v432, %v402
    %vm461 = vcmp.eq.s32.totalorder %v433, %v401
    %vm462 = vcmp.eq.s32.totalorder %v434, %v401
    %vm463 = vcmp.eq.s32.totalorder %v433, %v402
    %vm464 = vcmp.eq.s32.totalorder %v434, %v402
    %vm465 = vcmp.eq.s32.totalorder %v435, %v401
    %vm466 = vcmp.eq.s32.totalorder %v436, %v401
    %vm467 = vcmp.eq.s32.totalorder %v435, %v402
    %vm468 = vcmp.eq.s32.totalorder %v436, %v402
    %v469 = vsel %vm437, 1, 0
    %v470 = vsel %vm438, 1, 0
    %v471 = vsel %vm439, 1, 0
    %v472 = vsel %vm440, 1, 0
    %v473 = vsel %vm441, 1, 0
    %v474 = vsel %vm442, 1, 0
    %v475 = vsel %vm443, 1, 0
    %v476 = vsel %vm444, 1, 0
    %v477 = vsel %vm445, 1, 0
    %v478 = vsel %vm446, 1, 0
    %v479 = vsel %vm447, 1, 0
    %v480 = vsel %vm448, 1, 0
    %v481 = vsel %vm449, 1, 0
    %v482 = vsel %vm450, 1, 0
    %v483 = vsel %vm451, 1, 0
    %v484 = vsel %vm452, 1, 0
    %v485 = vsel %vm453, 1, 0
    %v486 = vsel %vm454, 1, 0
    %v487 = vsel %vm455, 1, 0
    %v488 = vsel %vm456, 1, 0
    %v489 = vsel %vm457, 1, 0
    %v490 = vsel %vm458, 1, 0
    %v491 = vsel %vm459, 1, 0
    %v492 = vsel %vm460, 1, 0
    %v493 = vsel %vm461, 1, 0
    %v494 = vsel %vm462, 1, 0
    %v495 = vsel %vm463, 1, 0
    %v496 = vsel %vm464, 1, 0
    %v497 = vsel %vm465, 1, 0
    %v498 = vsel %vm466, 1, 0
    %v499 = vsel %vm467, 1, 0
    %v500 = vsel %vm468, 1, 0
    %v501 = vcvt.s32.f32 %v469
    %v502 = vcvt.s32.f32 %v470
    %v503 = vcvt.s32.f32 %v471
    %v504 = vcvt.s32.f32 %v472
    %v505 = vcvt.s32.f32 %v473
    %v506 = vcvt.s32.f32 %v474
    %v507 = vcvt.s32.f32 %v475
    %v508 = vcvt.s32.f32 %v476
    %v509 = vcvt.s32.f32 %v477
    %v510 = vcvt.s32.f32 %v478
    %v511 = vcvt.s32.f32 %v479
    %v512 = vcvt.s32.f32 %v480
    %v513 = vcvt.s32.f32 %v481
    %v514 = vcvt.s32.f32 %v482
    %v515 = vcvt.s32.f32 %v483
    %v516 = vcvt.s32.f32 %v484
    %v517 = vcvt.s32.f32 %v485
    %v518 = vcvt.s32.f32 %v486
    %v519 = vcvt.s32.f32 %v487
    %v520 = vcvt.s32.f32 %v488
    %v521 = vcvt.s32.f32 %v489
    %v522 = vcvt.s32.f32 %v490
    %v523 = vcvt.s32.f32 %v491
    %v524 = vcvt.s32.f32 %v492
    %v525 = vcvt.s32.f32 %v493
    %v526 = vcvt.s32.f32 %v494
    %v527 = vcvt.s32.f32 %v495
    %v528 = vcvt.s32.f32 %v496
    %v529 = vcvt.s32.f32 %v497
    %v530 = vcvt.s32.f32 %v498
    %v531 = vcvt.s32.f32 %v499
    %v532 = vcvt.s32.f32 %v500
    %v534 = vperm.slane %v395, 0
    %v535 = vperm.slane %v395, 1
    %v538 = vmul.f32 %v501, %v534
    %v539 = vmul.f32 %v502, %v535
    %v540 = vmul.f32 %v503, %v534
    %v541 = vmul.f32 %v504, %v535
    %v542 = vmul.f32 %v505, %v534
    %v543 = vmul.f32 %v506, %v535
    %v544 = vmul.f32 %v507, %v534
    %v545 = vmul.f32 %v508, %v535
    %v546 = vmul.f32 %v509, %v534
    %v547 = vmul.f32 %v510, %v535
    %v548 = vmul.f32 %v511, %v534
    %v549 = vmul.f32 %v512, %v535
    %v550 = vmul.f32 %v513, %v534
    %v551 = vmul.f32 %v514, %v535
    %v552 = vmul.f32 %v515, %v534
    %v553 = vmul.f32 %v516, %v535
    %v554 = vmul.f32 %v517, %v534
    %v555 = vmul.f32 %v518, %v535
    %v556 = vmul.f32 %v519, %v534
    %v557 = vmul.f32 %v520, %v535
    %v558 = vmul.f32 %v521, %v534
    %v559 = vmul.f32 %v522, %v535
    %v560 = vmul.f32 %v523, %v534
    %v561 = vmul.f32 %v524, %v535
    %v562 = vmul.f32 %v525, %v534
    %v563 = vmul.f32 %v526, %v535
    %v564 = vmul.f32 %v527, %v534
    %v565 = vmul.f32 %v528, %v535
    %v566 = vmul.f32 %v529, %v534
    %v567 = vmul.f32 %v530, %v535
    %v568 = vmul.f32 %v531, %v534
    %v569 = vmul.f32 %v532, %v535
    %v570 = vpack.c.bf16 %v539, %v538
    %v571 = vpack.c.bf16 %v541, %v540
    %v572 = vpack.c.bf16 %v543, %v542
    %v573 = vpack.c.bf16 %v545, %v544
    %v574 = vpack.c.bf16 %v547, %v546
    %v575 = vpack.c.bf16 %v549, %v548
    %v576 = vpack.c.bf16 %v551, %v550
    %v577 = vpack.c.bf16 %v553, %v552
    %v578 = vpack.c.bf16 %v555, %v554
    %v579 = vpack.c.bf16 %v557, %v556
    %v580 = vpack.c.bf16 %v559, %v558
    %v581 = vpack.c.bf16 %v561, %v560
    %v582 = vpack.c.bf16 %v563, %v562
    %v583 = vpack.c.bf16 %v565, %v564
    %v584 = vpack.c.bf16 %v567, %v566
    %v585 = vpack.c.bf16 %v569, %v568
    %v586 = vrot.slane %v399, 7
    %v587 = vsel %vm404, %v398, %v586
    %v588 = vsel %vm254, %v398, %v586
    %v589 = vrot.slane %v588, 1
    %v590 = vsel %vm256, %v398, %v586
    %v591 = vrot.slane %v590, 2
    %v592 = vsel %vm258, %v398, %v586
    %v593 = vrot.slane %v592, 3
    %v594 = vsel %vm260, %v398, %v586
    %v595 = vrot.slane %v594, 4
    %v596 = vsel %vm262, %v398, %v586
    %v597 = vrot.slane %v596, 5
    %v598 = vsel %vm264, %v398, %v586
    %v599 = vrot.slane %v598, 6
    %v600 = vsel %vm418, %v586, %v398
    %v601 = vrot.slane %v600, 7
    %v602 = vperm.slane %v587, 0
    %v603 = vperm.slane %v587, 1
    %v604 = vperm.slane %v589, 0
    %v605 = vperm.slane %v589, 1
    %v606 = vperm.slane %v591, 0
    %v607 = vperm.slane %v591, 1
    %v608 = vperm.slane %v593, 0
    %v609 = vperm.slane %v593, 1
    %v610 = vperm.slane %v595, 0
    %v611 = vperm.slane %v595, 1
    %v612 = vperm.slane %v597, 0
    %v613 = vperm.slane %v597, 1
    %v614 = vperm.slane %v599, 0
    %v615 = vperm.slane %v599, 1
    %v616 = vperm.slane %v601, 0
    %v617 = vperm.slane %v601, 1
    %vm618 = vcmp.eq.s32.totalorder %v602, %v401
    %vm619 = vcmp.eq.s32.totalorder %v603, %v401
    %vm620 = vcmp.eq.s32.totalorder %v602, %v402
    %vm621 = vcmp.eq.s32.totalorder %v603, %v402
    %vm622 = vcmp.eq.s32.totalorder %v604, %v401
    %vm623 = vcmp.eq.s32.totalorder %v605, %v401
    %vm624 = vcmp.eq.s32.totalorder %v604, %v402
    %vm625 = vcmp.eq.s32.totalorder %v605, %v402
    %vm626 = vcmp.eq.s32.totalorder %v606, %v401
    %vm627 = vcmp.eq.s32.totalorder %v607, %v401
    %vm628 = vcmp.eq.s32.totalorder %v606, %v402
    %vm629 = vcmp.eq.s32.totalorder %v607, %v402
    %vm630 = vcmp.eq.s32.totalorder %v608, %v401
    %vm631 = vcmp.eq.s32.totalorder %v609, %v401
    %vm632 = vcmp.eq.s32.totalorder %v608, %v402
    %vm633 = vcmp.eq.s32.totalorder %v609, %v402
    %vm634 = vcmp.eq.s32.totalorder %v610, %v401
    %vm635 = vcmp.eq.s32.totalorder %v611, %v401
    %vm636 = vcmp.eq.s32.totalorder %v610, %v402
    %vm637 = vcmp.eq.s32.totalorder %v611, %v402
    %vm638 = vcmp.eq.s32.totalorder %v612, %v401
    %vm639 = vcmp.eq.s32.totalorder %v613, %v401
    %vm640 = vcmp.eq.s32.totalorder %v612, %v402
    %vm641 = vcmp.eq.s32.totalorder %v613, %v402
    %vm642 = vcmp.eq.s32.totalorder %v614, %v401
    %vm643 = vcmp.eq.s32.totalorder %v615, %v401
    %vm644 = vcmp.eq.s32.totalorder %v614, %v402
    %vm645 = vcmp.eq.s32.totalorder %v615, %v402
    %vm646 = vcmp.eq.s32.totalorder %v616, %v401
    %vm647 = vcmp.eq.s32.totalorder %v617, %v401
    %vm648 = vcmp.eq.s32.totalorder %v616, %v402
    %vm649 = vcmp.eq.s32.totalorder %v617, %v402
    %v650 = vsel %vm618, 1, 0
    %v651 = vsel %vm619, 1, 0
    %v652 = vsel %vm620, 1, 0
    %v653 = vsel %vm621, 1, 0
    %v654 = vsel %vm622, 1, 0
    %v655 = vsel %vm623, 1, 0
    %v656 = vsel %vm624, 1, 0
    %v657 = vsel %vm625, 1, 0
    %v658 = vsel %vm626, 1, 0
    %v659 = vsel %vm627, 1, 0
    %v660 = vsel %vm628, 1, 0
    %v661 = vsel %vm629, 1, 0
    %v662 = vsel %vm630, 1, 0
    %v663 = vsel %vm631, 1, 0
    %v664 = vsel %vm632, 1, 0
    %v665 = vsel %vm633, 1, 0
    %v666 = vsel %vm634, 1, 0
    %v667 = vsel %vm635, 1, 0
    %v668 = vsel %vm636, 1, 0
    %v669 = vsel %vm637, 1, 0
    %v670 = vsel %vm638, 1, 0
    %v671 = vsel %vm639, 1, 0
    %v672 = vsel %vm640, 1, 0
    %v673 = vsel %vm641, 1, 0
    %v674 = vsel %vm642, 1, 0
    %v675 = vsel %vm643, 1, 0
    %v676 = vsel %vm644, 1, 0
    %v677 = vsel %vm645, 1, 0
    %v678 = vsel %vm646, 1, 0
    %v679 = vsel %vm647, 1, 0
    %v680 = vsel %vm648, 1, 0
    %v681 = vsel %vm649, 1, 0
    %v682 = vcvt.s32.f32 %v650
    %v683 = vcvt.s32.f32 %v651
    %v684 = vcvt.s32.f32 %v652
    %v685 = vcvt.s32.f32 %v653
    %v686 = vcvt.s32.f32 %v654
    %v687 = vcvt.s32.f32 %v655
    %v688 = vcvt.s32.f32 %v656
    %v689 = vcvt.s32.f32 %v657
    %v690 = vcvt.s32.f32 %v658
    %v691 = vcvt.s32.f32 %v659
    %v692 = vcvt.s32.f32 %v660
    %v693 = vcvt.s32.f32 %v661
    %v694 = vcvt.s32.f32 %v662
    %v695 = vcvt.s32.f32 %v663
    %v696 = vcvt.s32.f32 %v664
    %v697 = vcvt.s32.f32 %v665
    %v698 = vcvt.s32.f32 %v666
    %v699 = vcvt.s32.f32 %v667
    %v700 = vcvt.s32.f32 %v668
    %v701 = vcvt.s32.f32 %v669
    %v702 = vcvt.s32.f32 %v670
    %v703 = vcvt.s32.f32 %v671
    %v704 = vcvt.s32.f32 %v672
    %v705 = vcvt.s32.f32 %v673
    %v706 = vcvt.s32.f32 %v674
    %v707 = vcvt.s32.f32 %v675
    %v708 = vcvt.s32.f32 %v676
    %v709 = vcvt.s32.f32 %v677
    %v710 = vcvt.s32.f32 %v678
    %v711 = vcvt.s32.f32 %v679
    %v712 = vcvt.s32.f32 %v680
    %v713 = vcvt.s32.f32 %v681
    %v714 = vpack.c.bf16 %v683, %v682
    %v715 = vpack.c.bf16 %v685, %v684
    %v716 = vpack.c.bf16 %v687, %v686
    %v717 = vpack.c.bf16 %v689, %v688
    %v718 = vpack.c.bf16 %v691, %v690
    %v719 = vpack.c.bf16 %v693, %v692
    %v720 = vpack.c.bf16 %v695, %v694
    %v721 = vpack.c.bf16 %v697, %v696
    %v722 = vpack.c.bf16 %v699, %v698
    %v723 = vpack.c.bf16 %v701, %v700
    %v724 = vpack.c.bf16 %v703, %v702
    %v725 = vpack.c.bf16 %v705, %v704
    %v726 = vpack.c.bf16 %v707, %v706
    %v727 = vpack.c.bf16 %v709, %v708
    %v728 = vpack.c.bf16 %v711, %v710
    %v729 = vpack.c.bf16 %v713, %v712
    %v732 = vunpack.c.l.b16 %v570
    %v733 = vunpack.c.h.b16 %v570
    %v734 = vunpack.c.l.b16 %v571
    %v735 = vunpack.c.h.b16 %v571
    %v736 = vpack.c.b16 %v734, %v732
    %v737 = vpack.c.b16 %v735, %v733
    %v742 = vunpack.c.l.b16 %v714
    %v743 = vunpack.c.h.b16 %v714
    %v744 = vunpack.c.l.b16 %v715
    %v745 = vunpack.c.h.b16 %v715
    %v746 = vpack.c.b16 %v744, %v742
    %v747 = vpack.c.b16 %v745, %v743
    %750 = vmatpush.bf16.xpose.msra.mxu0 0
    %751 = vmatpush.bf16.xpose.msra.mxu0 0
    %752 = vmatpush.bf16.xpose.msra.mxu0 0
    %753 = vmatpush.bf16.xpose.msra.mxu0 0
    %754 = vmatpush.bf16.xpose.msra.mxu0 0
    %755 = vmatpush.bf16.xpose.msra.mxu0 0
    %756 = vmatpush.bf16.xpose.msra.mxu0 0
    %757 = vmatpush.bf16.xpose.msra.mxu0 %v746
    %758 = vmatmul.bf16.gmra.mxu0 %v736
    %v759 = vpop.f32.mrf.mxu0
    %v760 = vadd.f32 0.0, %v759
    %v761 = vpop.f32.mrf.mxu0
    %v762 = vadd.f32 0.0, %v761
    %763 = vdwg.mxu0
    %764 = vmatpush.bf16.xpose.msra.mxu0 0
    %765 = vmatpush.bf16.xpose.msra.mxu0 0
    %766 = vmatpush.bf16.xpose.msra.mxu0 0
    %767 = vmatpush.bf16.xpose.msra.mxu0 0
    %768 = vmatpush.bf16.xpose.msra.mxu0 0
    %769 = vmatpush.bf16.xpose.msra.mxu0 0
    %770 = vmatpush.bf16.xpose.msra.mxu0 0
    %771 = vmatpush.bf16.xpose.msra.mxu0 %v747
    %772 = vmatmul.bf16.gmra.mxu0 %v737
    %v773 = vpop.f32.mrf.mxu0
    %v774 = vadd.f32 %v760, %v773
    %v775 = vpop.f32.mrf.mxu0
    %v776 = vadd.f32 %v762, %v775
    %777 = vdwg.mxu0
    %v780 = vunpack.c.l.b16 %v572
    %v781 = vunpack.c.h.b16 %v572
    %v782 = vunpack.c.l.b16 %v573
    %v783 = vunpack.c.h.b16 %v573
    %v784 = vpack.c.b16 %v782, %v780
    %v785 = vpack.c.b16 %v783, %v781
    %v790 = vunpack.c.l.b16 %v716
    %v791 = vunpack.c.h.b16 %v716
    %v792 = vunpack.c.l.b16 %v717
    %v793 = vunpack.c.h.b16 %v717
    %v794 = vpack.c.b16 %v792, %v790
    %v795 = vpack.c.b16 %v793, %v791
    %798 = vmatpush.bf16.xpose.msra.mxu0 0
    %799 = vmatpush.bf16.xpose.msra.mxu0 0
    %800 = vmatpush.bf16.xpose.msra.mxu0 0
    %801 = vmatpush.bf16.xpose.msra.mxu0 0
    %802 = vmatpush.bf16.xpose.msra.mxu0 0
    %803 = vmatpush.bf16.xpose.msra.mxu0 0
    %804 = vmatpush.bf16.xpose.msra.mxu0 0
    %805 = vmatpush.bf16.xpose.msra.mxu0 %v794
    %806 = vmatmul.bf16.gmra.mxu0 %v784
    %v807 = vpop.f32.mrf.mxu0
    %v808 = vadd.f32 0.0, %v807
    %v809 = vpop.f32.mrf.mxu0
    %v810 = vadd.f32 0.0, %v809
    %811 = vdwg.mxu0
    %812 = vmatpush.bf16.xpose.msra.mxu0 0
    %813 = vmatpush.bf16.xpose.msra.mxu0 0
    %814 = vmatpush.bf16.xpose.msra.mxu0 0
    %815 = vmatpush.bf16.xpose.msra.mxu0 0
    %816 = vmatpush.bf16.xpose.msra.mxu0 0
    %817 = vmatpush.bf16.xpose.msra.mxu0 0
    %818 = vmatpush.bf16.xpose.msra.mxu0 0
    %819 = vmatpush.bf16.xpose.msra.mxu0 %v795
    %820 = vmatmul.bf16.gmra.mxu0 %v785
    %v821 = vpop.f32.mrf.mxu0
    %v822 = vadd.f32 %v808, %v821
    %v823 = vpop.f32.mrf.mxu0
    %v824 = vadd.f32 %v810, %v823
    %825 = vdwg.mxu0
    %v828 = vunpack.c.l.b16 %v574
    %v829 = vunpack.c.h.b16 %v574
    %v830 = vunpack.c.l.b16 %v575
    %v831 = vunpack.c.h.b16 %v575
    %v832 = vpack.c.b16 %v830, %v828
    %v833 = vpack.c.b16 %v831, %v829
    %v838 = vunpack.c.l.b16 %v718
    %v839 = vunpack.c.h.b16 %v718
    %v840 = vunpack.c.l.b16 %v719
    %v841 = vunpack.c.h.b16 %v719
    %v842 = vpack.c.b16 %v840, %v838
    %v843 = vpack.c.b16 %v841, %v839
    %846 = vmatpush.bf16.xpose.msra.mxu0 0
    %847 = vmatpush.bf16.xpose.msra.mxu0 0
    %848 = vmatpush.bf16.xpose.msra.mxu0 0
    %849 = vmatpush.bf16.xpose.msra.mxu0 0
    %850 = vmatpush.bf16.xpose.msra.mxu0 0
    %851 = vmatpush.bf16.xpose.msra.mxu0 0
    %852 = vmatpush.bf16.xpose.msra.mxu0 0
    %853 = vmatpush.bf16.xpose.msra.mxu0 %v842
    %854 = vmatmul.bf16.gmra.mxu0 %v832
    %v855 = vpop.f32.mrf.mxu0
    %v856 = vadd.f32 0.0, %v855
    %v857 = vpop.f32.mrf.mxu0
    %v858 = vadd.f32 0.0, %v857
    %859 = vdwg.mxu0
    %860 = vmatpush.bf16.xpose.msra.mxu0 0
    %861 = vmatpush.bf16.xpose.msra.mxu0 0
    %862 = vmatpush.bf16.xpose.msra.mxu0 0
    %863 = vmatpush.bf16.xpose.msra.mxu0 0
    %864 = vmatpush.bf16.xpose.msra.mxu0 0
    %865 = vmatpush.bf16.xpose.msra.mxu0 0
    %866 = vmatpush.bf16.xpose.msra.mxu0 0
    %867 = vmatpush.bf16.xpose.msra.mxu0 %v843
    %868 = vmatmul.bf16.gmra.mxu0 %v833
    %v869 = vpop.f32.mrf.mxu0
    %v870 = vadd.f32 %v856, %v869
    %v871 = vpop.f32.mrf.mxu0
    %v872 = vadd.f32 %v858, %v871
    %873 = vdwg.mxu0
    %v876 = vunpack.c.l.b16 %v576
    %v877 = vunpack.c.h.b16 %v576
    %v878 = vunpack.c.l.b16 %v577
    %v879 = vunpack.c.h.b16 %v577
    %v880 = vpack.c.b16 %v878, %v876
    %v881 = vpack.c.b16 %v879, %v877
    %v886 = vunpack.c.l.b16 %v720
    %v887 = vunpack.c.h.b16 %v720
    %v888 = vunpack.c.l.b16 %v721
    %v889 = vunpack.c.h.b16 %v721
    %v890 = vpack.c.b16 %v888, %v886
    %v891 = vpack.c.b16 %v889, %v887
    %894 = vmatpush.bf16.xpose.msra.mxu0 0
    %895 = vmatpush.bf16.xpose.msra.mxu0 0
    %896 = vmatpush.bf16.xpose.msra.mxu0 0
    %897 = vmatpush.bf16.xpose.msra.mxu0 0
    %898 = vmatpush.bf16.xpose.msra.mxu0 0
    %899 = vmatpush.bf16.xpose.msra.mxu0 0
    %900 = vmatpush.bf16.xpose.msra.mxu0 0
    %901 = vmatpush.bf16.xpose.msra.mxu0 %v890
    %902 = vmatmul.bf16.gmra.mxu0 %v880
    %v903 = vpop.f32.mrf.mxu0
    %v904 = vadd.f32 0.0, %v903
    %v905 = vpop.f32.mrf.mxu0
    %v906 = vadd.f32 0.0, %v905
    %907 = vdwg.mxu0
    %908 = vmatpush.bf16.xpose.msra.mxu0 0
    %909 = vmatpush.bf16.xpose.msra.mxu0 0
    %910 = vmatpush.bf16.xpose.msra.mxu0 0
    %911 = vmatpush.bf16.xpose.msra.mxu0 0
    %912 = vmatpush.bf16.xpose.msra.mxu0 0
    %913 = vmatpush.bf16.xpose.msra.mxu0 0
    %914 = vmatpush.bf16.xpose.msra.mxu0 0
    %915 = vmatpush.bf16.xpose.msra.mxu0 %v891
    %916 = vmatmul.bf16.gmra.mxu0 %v881
    %v917 = vpop.f32.mrf.mxu0
    %v918 = vadd.f32 %v904, %v917
    %v919 = vpop.f32.mrf.mxu0
    %v920 = vadd.f32 %v906, %v919
    %921 = vdwg.mxu0
    %v924 = vunpack.c.l.b16 %v578
    %v925 = vunpack.c.h.b16 %v578
    %v926 = vunpack.c.l.b16 %v579
    %v927 = vunpack.c.h.b16 %v579
    %v928 = vpack.c.b16 %v926, %v924
    %v929 = vpack.c.b16 %v927, %v925
    %v934 = vunpack.c.l.b16 %v722
    %v935 = vunpack.c.h.b16 %v722
    %v936 = vunpack.c.l.b16 %v723
    %v937 = vunpack.c.h.b16 %v723
    %v938 = vpack.c.b16 %v936, %v934
    %v939 = vpack.c.b16 %v937, %v935
    %942 = vmatpush.bf16.xpose.msra.mxu0 0
    %943 = vmatpush.bf16.xpose.msra.mxu0 0
    %944 = vmatpush.bf16.xpose.msra.mxu0 0
    %945 = vmatpush.bf16.xpose.msra.mxu0 0
    %946 = vmatpush.bf16.xpose.msra.mxu0 0
    %947 = vmatpush.bf16.xpose.msra.mxu0 0
    %948 = vmatpush.bf16.xpose.msra.mxu0 0
    %949 = vmatpush.bf16.xpose.msra.mxu0 %v938
    %950 = vmatmul.bf16.gmra.mxu0 %v928
    %v951 = vpop.f32.mrf.mxu0
    %v952 = vadd.f32 0.0, %v951
    %v953 = vpop.f32.mrf.mxu0
    %v954 = vadd.f32 0.0, %v953
    %955 = vdwg.mxu0
    %956 = vmatpush.bf16.xpose.msra.mxu0 0
    %957 = vmatpush.bf16.xpose.msra.mxu0 0
    %958 = vmatpush.bf16.xpose.msra.mxu0 0
    %959 = vmatpush.bf16.xpose.msra.mxu0 0
    %960 = vmatpush.bf16.xpose.msra.mxu0 0
    %961 = vmatpush.bf16.xpose.msra.mxu0 0
    %962 = vmatpush.bf16.xpose.msra.mxu0 0
    %963 = vmatpush.bf16.xpose.msra.mxu0 %v939
    %964 = vmatmul.bf16.gmra.mxu0 %v929
    %v965 = vpop.f32.mrf.mxu0
    %v966 = vadd.f32 %v952, %v965
    %v967 = vpop.f32.mrf.mxu0
    %v968 = vadd.f32 %v954, %v967
    %969 = vdwg.mxu0
    %v972 = vunpack.c.l.b16 %v580
    %v973 = vunpack.c.h.b16 %v580
    %v974 = vunpack.c.l.b16 %v581
    %v975 = vunpack.c.h.b16 %v581
    %v976 = vpack.c.b16 %v974, %v972
    %v977 = vpack.c.b16 %v975, %v973
    %v982 = vunpack.c.l.b16 %v724
    %v983 = vunpack.c.h.b16 %v724
    %v984 = vunpack.c.l.b16 %v725
    %v985 = vunpack.c.h.b16 %v725
    %v986 = vpack.c.b16 %v984, %v982
    %v987 = vpack.c.b16 %v985, %v983
    %990 = vmatpush.bf16.xpose.msra.mxu0 0
    %991 = vmatpush.bf16.xpose.msra.mxu0 0
    %992 = vmatpush.bf16.xpose.msra.mxu0 0
    %993 = vmatpush.bf16.xpose.msra.mxu0 0
    %994 = vmatpush.bf16.xpose.msra.mxu0 0
    %995 = vmatpush.bf16.xpose.msra.mxu0 0
    %996 = vmatpush.bf16.xpose.msra.mxu0 0
    %997 = vmatpush.bf16.xpose.msra.mxu0 %v986
    %998 = vmatmul.bf16.gmra.mxu0 %v976
    %v999 = vpop.f32.mrf.mxu0
    %v1000 = vadd.f32 0.0, %v999
    %v1001 = vpop.f32.mrf.mxu0
    %v1002 = vadd.f32 0.0, %v1001
    %1003 = vdwg.mxu0
    %1004 = vmatpush.bf16.xpose.msra.mxu0 0
    %1005 = vmatpush.bf16.xpose.msra.mxu0 0
    %1006 = vmatpush.bf16.xpose.msra.mxu0 0
    %1007 = vmatpush.bf16.xpose.msra.mxu0 0
    %1008 = vmatpush.bf16.xpose.msra.mxu0 0
    %1009 = vmatpush.bf16.xpose.msra.mxu0 0
    %1010 = vmatpush.bf16.xpose.msra.mxu0 0
    %1011 = vmatpush.bf16.xpose.msra.mxu0 %v987
    %1012 = vmatmul.bf16.gmra.mxu0 %v977
    %v1013 = vpop.f32.mrf.mxu0
    %v1014 = vadd.f32 %v1000, %v1013
    %v1015 = vpop.f32.mrf.mxu0
    %v1016 = vadd.f32 %v1002, %v1015
    %1017 = vdwg.mxu0
    %v1020 = vunpack.c.l.b16 %v582
    %v1021 = vunpack.c.h.b16 %v582
    %v1022 = vunpack.c.l.b16 %v583
    %v1023 = vunpack.c.h.b16 %v583
    %v1024 = vpack.c.b16 %v1022, %v1020
    %v1025 = vpack.c.b16 %v1023, %v1021
    %v1030 = vunpack.c.l.b16 %v726
    %v1031 = vunpack.c.h.b16 %v726
    %v1032 = vunpack.c.l.b16 %v727
    %v1033 = vunpack.c.h.b16 %v727
    %v1034 = vpack.c.b16 %v1032, %v1030
    %v1035 = vpack.c.b16 %v1033, %v1031
    %1038 = vmatpush.bf16.xpose.msra.mxu0 0
    %1039 = vmatpush.bf16.xpose.msra.mxu0 0
    %1040 = vmatpush.bf16.xpose.msra.mxu0 0
    %1041 = vmatpush.bf16.xpose.msra.mxu0 0
    %1042 = vmatpush.bf16.xpose.msra.mxu0 0
    %1043 = vmatpush.bf16.xpose.msra.mxu0 0
    %1044 = vmatpush.bf16.xpose.msra.mxu0 0
    %1045 = vmatpush.bf16.xpose.msra.mxu0 %v1034
    %1046 = vmatmul.bf16.gmra.mxu0 %v1024
    %v1047 = vpop.f32.mrf.mxu0
    %v1048 = vadd.f32 0.0, %v1047
    %v1049 = vpop.f32.mrf.mxu0
    %v1050 = vadd.f32 0.0, %v1049
    %1051 = vdwg.mxu0
    %1052 = vmatpush.bf16.xpose.msra.mxu0 0
    %1053 = vmatpush.bf16.xpose.msra.mxu0 0
    %1054 = vmatpush.bf16.xpose.msra.mxu0 0
    %1055 = vmatpush.bf16.xpose.msra.mxu0 0
    %1056 = vmatpush.bf16.xpose.msra.mxu0 0
    %1057 = vmatpush.bf16.xpose.msra.mxu0 0
    %1058 = vmatpush.bf16.xpose.msra.mxu0 0
    %1059 = vmatpush.bf16.xpose.msra.mxu0 %v1035
    %1060 = vmatmul.bf16.gmra.mxu0 %v1025
    %v1061 = vpop.f32.mrf.mxu0
    %v1062 = vadd.f32 %v1048, %v1061
    %v1063 = vpop.f32.mrf.mxu0
    %v1064 = vadd.f32 %v1050, %v1063
    %1065 = vdwg.mxu0
    %v1068 = vunpack.c.l.b16 %v584
    %v1069 = vunpack.c.h.b16 %v584
    %v1070 = vunpack.c.l.b16 %v585
    %v1071 = vunpack.c.h.b16 %v585
    %v1072 = vpack.c.b16 %v1070, %v1068
    %v1073 = vpack.c.b16 %v1071, %v1069
    %v1078 = vunpack.c.l.b16 %v728
    %v1079 = vunpack.c.h.b16 %v728
    %v1080 = vunpack.c.l.b16 %v729
    %v1081 = vunpack.c.h.b16 %v729
    %v1082 = vpack.c.b16 %v1080, %v1078
    %v1083 = vpack.c.b16 %v1081, %v1079
    %1086 = vmatpush.bf16.xpose.msra.mxu0 0
    %1087 = vmatpush.bf16.xpose.msra.mxu0 0
    %1088 = vmatpush.bf16.xpose.msra.mxu0 0
    %1089 = vmatpush.bf16.xpose.msra.mxu0 0
    %1090 = vmatpush.bf16.xpose.msra.mxu0 0
    %1091 = vmatpush.bf16.xpose.msra.mxu0 0
    %1092 = vmatpush.bf16.xpose.msra.mxu0 0
    %1093 = vmatpush.bf16.xpose.msra.mxu0 %v1082
    %1094 = vmatmul.bf16.gmra.mxu0 %v1072
    %v1095 = vpop.f32.mrf.mxu0
    %v1096 = vadd.f32 0.0, %v1095
    %v1097 = vpop.f32.mrf.mxu0
    %v1098 = vadd.f32 0.0, %v1097
    %1099 = vdwg.mxu0
    %1100 = vmatpush.bf16.xpose.msra.mxu0 0
    %1101 = vmatpush.bf16.xpose.msra.mxu0 0
    %1102 = vmatpush.bf16.xpose.msra.mxu0 0
    %1103 = vmatpush.bf16.xpose.msra.mxu0 0
    %1104 = vmatpush.bf16.xpose.msra.mxu0 0
    %1105 = vmatpush.bf16.xpose.msra.mxu0 0
    %1106 = vmatpush.bf16.xpose.msra.mxu0 0
    %1107 = vmatpush.bf16.xpose.msra.mxu0 %v1083
    %1108 = vmatmul.bf16.gmra.mxu0 %v1073
    %v1109 = vpop.f32.mrf.mxu0
    %v1110 = vadd.f32 %v1096, %v1109
    %v1111 = vpop.f32.mrf.mxu0
    %v1112 = vadd.f32 %v1098, %v1111
    %1113 = vdwg.mxu0
    %v1114 = vmul.f32 %v774, 0.0051020407
    %v1115 = vmul.f32 %v776, 0.0051020407
    %v1116 = vmul.f32 %v822, 0.0051020407
    %v1117 = vmul.f32 %v824, 0.0051020407
    %v1118 = vmul.f32 %v870, 0.0051020407
    %v1119 = vmul.f32 %v872, 0.0051020407
    %v1120 = vmul.f32 %v918, 0.0051020407
    %v1121 = vmul.f32 %v920, 0.0051020407
    %v1122 = vmul.f32 %v966, 0.0051020407
    %v1123 = vmul.f32 %v968, 0.0051020407
    %v1124 = vmul.f32 %v1014, 0.0051020407
    %v1125 = vmul.f32 %v1016, 0.0051020407
    %v1126 = vmul.f32 %v1062, 0.0051020407
    %v1127 = vmul.f32 %v1064, 0.0051020407
    %v1128 = vmul.f32 %v1110, 0.0051020407
    %v1129 = vmul.f32 %v1112, 0.0051020407
    %vm1130 = vcmask 130048
    %1131 = vst.msk [vmem:[#allocation7] sm:$0xff] %vm1130, %v1114
    %1132 = vst.msk [vmem:[#allocation7 + $0x8] sm:$0xff] %vm1130, %v1115
    %1133 = vst.msk [vmem:[#allocation7 + $0x10] sm:$0xff] %vm1130, %v1116
    %1134 = vst.msk [vmem:[#allocation7 + $0x18] sm:$0xff] %vm1130, %v1117
    %1135 = vst.msk [vmem:[#allocation7 + $0x20] sm:$0xff] %vm1130, %v1118
    %1136 = vst.msk [vmem:[#allocation7 + $0x28] sm:$0xff] %vm1130, %v1119
    %1137 = vst.msk [vmem:[#allocation7 + $0x30] sm:$0xff] %vm1130, %v1120
    %1138 = vst.msk [vmem:[#allocation7 + $0x38] sm:$0xff] %vm1130, %v1121
    %1139 = vst.msk [vmem:[#allocation7 + $0x40] sm:$0xff] %vm1130, %v1122
    %1140 = vst.msk [vmem:[#allocation7 + $0x48] sm:$0xff] %vm1130, %v1123
    %1141 = vst.msk [vmem:[#allocation7 + $0x50] sm:$0xff] %vm1130, %v1124
    %1142 = vst.msk [vmem:[#allocation7 + $0x58] sm:$0xff] %vm1130, %v1125
    %1143 = vst.msk [vmem:[#allocation7 + $0x60] sm:$0xff] %vm1130, %v1126
    %1144 = vst.msk [vmem:[#allocation7 + $0x68] sm:$0xff] %vm1130, %v1127
    %1145 = vst.msk [vmem:[#allocation7 + $0x70] sm:$0xff] %vm1130, %v1128
    %1146 = vst.msk [vmem:[#allocation7 + $0x78] sm:$0xff] %vm1130, %v1129
    // Predicated region
    $region18: #{tpu_custom_call.1} parent=1 // pred_check
      _
    $region19: #{tpu_custom_call.1} parent=1 // pred_check_branch
      %1148 = sbr.rel (0) target = $region21
    $region20: #{tpu_custom_call.1} parent=1 // pred_region
      %1150 = vsyncadd [#allocation4], 0
      %s1151 = sshll.u32 [#allocation7], 4
      %s1152 = int_to_ptr.vmem [resolvable:$true] %s1151
      %s1153 = sshll.u32 %s2, 4
      %s1154 = int_to_ptr.hbm [resolvable:$true] %s1153
      %1159 = dma.vmem_to_hbm [thread:$0]  %s1152, 2048, %s1154, [#allocation4], 128, 128, 8
    $region21: #{tpu_custom_call.1} parent=1 // pred_fallthru
      _
    // Predicated region
    $region22: #{tpu_custom_call.1} parent=1 // pred_check
      _
    $region23: #{tpu_custom_call.1} parent=1 // pred_check_branch
      %1161 = sbr.rel (0) target = $region25
    $region24: #{tpu_custom_call.1} parent=1 // pred_region
      %1163 = dma.done [#allocation4], 2048
    $region25: #{tpu_custom_call.1} parent=1 // pred_fallthru
      _
    %1164 = vsyncpa [#allocation3], 1
    %1165 = vsyncpa [#allocation6], 1
    %1166 = vsyncpa [#allocation4], 1

</llo_original>
